<compile_context>
chip_gen: v7x
topology: tpu7x:2x2x1
jax: 0.10.0
libtpu: 0.0.40
codegen_flags: <defaults>
</compile_context>

<pallas_src>
import jax
import jax.numpy as jnp
from jax import lax
from jax.experimental import pallas as pl
from jax.experimental.pallas import tpu as pltpu

B, C_IN, H, W = 2, 4, 16, 16
C_OUT = 32
KH = KW = 3
HW = H * W
K_RAW = KH * KW * C_IN          # 36: im2col contraction depth (NOT padded in HBM)
N_PAD = 128                     # lane-dense channel dim (C_OUT padded to 128)
LANE = 128                      # lane-dense output slab; real output is column 0


def regression_cnn_kernel(p_ref, wconv_ref, bconv_ref, wfc_ref, bfc_ref, o_ref):
    # p_ref    : (B*HW, K_RAW)   im2col patches (K un-padded; Mosaic pads in VMEM)
    # wconv_ref: (K_RAW, N_PAD)  repacked conv weight (c_in,kh,kw ordering on K)
    # bconv_ref: (1, N_PAD)      conv bias (zero-padded lanes)
    # wfc_ref  : (1, N_PAD)      FC weight row, pre-scaled by 1/(H*W) (zero-padded)
    # bfc_ref  : (1, 1) in SMEM  FC bias (scalar path)
    # o_ref    : (B, LANE)       per-sample prediction broadcast along lanes

    # Whole 3x3/pad-1 convolution as a single MXU matmul (f32 accumulation).
    acc = jnp.dot(p_ref[...], wconv_ref[...], preferred_element_type=jnp.float32)
    acc = jnp.maximum(acc + bconv_ref[...], 0.0)                 # bias + ReLU, (B*HW, N_PAD)

    # Global average pool: per-sample sum over the HW rows (mean scale folded into wfc).
    pooled = jnp.sum(acc.reshape(B, HW, N_PAD), axis=1)          # (B, N_PAD)

    # Final FC as a VPU multiply + cross-lane reduce; padded lanes contribute 0.
    out = jnp.sum(pooled * wfc_ref[...], axis=1, keepdims=True) + bfc_ref[0, 0]  # (B, 1)
    o_ref[...] = jnp.broadcast_to(out, (B, LANE))


@jax.jit
def regression_cnn_forward(x_nchw, params):
    """x_nchw: (B, C_IN, H, W) float32  ->  (B, 1) float32 regression predictions."""
    w_conv, b_conv, w_fc, b_fc = params

    # --- im2col prep as ONE XLA conv op (no 9-tap slice/concat, no NCHW->NHWC copy) ---
    # Output feature ordering is (c_in major, kh, kw) per conv_general_dilated_patches.
    patches = lax.conv_general_dilated_patches(
        x_nchw.astype(jnp.float32),
        filter_shape=(KH, KW),
        window_strides=(1, 1),
        padding="SAME",
        dimension_numbers=("NCHW", "HWIO", "NHWC"),
    ).reshape(B * HW, K_RAW)                                      # (B*HW, 36), un-padded

    # Conv weight repacked to match the (c_in, kh, kw) K ordering; N padded to 128.
    w_mat = jnp.pad(
        jnp.transpose(w_conv, (2, 0, 1, 3)).reshape(K_RAW, C_OUT),  # (36, 32)
        ((0, 0), (0, N_PAD - C_OUT)))                               # (36, 128)
    b_row = jnp.pad(b_conv.reshape(1, C_OUT), ((0, 0), (0, N_PAD - C_OUT)))      # (1, 128)
    wfc_row = jnp.pad((w_fc[:, 0] / float(HW)).reshape(1, C_OUT),
                      ((0, 0), (0, N_PAD - C_OUT)))                               # (1, 128)
    bfc2 = b_fc.reshape(1, 1)                                                     # SMEM scalar

    out_slab = pl.pallas_call(
        regression_cnn_kernel,
        out_shape=jax.ShapeDtypeStruct((B, LANE), jnp.float32),
        grid=(1,),
        in_specs=[
            pl.BlockSpec((B * HW, K_RAW), lambda i: (0, 0)),      # full-array block, K=36
            pl.BlockSpec((K_RAW, N_PAD), lambda i: (0, 0)),       # full-array block, K=36
            pl.BlockSpec((1, N_PAD), lambda i: (0, 0)),
            pl.BlockSpec((1, N_PAD), lambda i: (0, 0)),
            pl.BlockSpec(memory_space=pltpu.MemorySpace.SMEM),    # scalar FC bias in SMEM
        ],
        out_specs=pl.BlockSpec((B, LANE), lambda i: (0, 0)),
        compiler_params=pltpu.CompilerParams(dimension_semantics=("arbitrary",)),
    )(patches, w_mat, b_row, wfc_row, bfc2)

    return out_slab[:, :1]                                        # (B, 1)


def reference_forward(x_nchw, params):
    """Pure-JAX reference of the same CNN (for correctness check)."""
    w_conv, b_conv, w_fc, b_fc = params
    x = jnp.transpose(x_nchw, (0, 2, 3, 1)).astype(jnp.float32)
    y = lax.conv_general_dilated(
        x, w_conv, window_strides=(1, 1), padding="SAME",
        dimension_numbers=("NHWC", "HWIO", "NHWC"))
    y = jnp.maximum(y + b_conv, 0.0)
    pooled = jnp.mean(y, axis=(1, 2))
    return pooled @ w_fc + b_fc


def init_params(key):
    k1, k2, k3, k4 = jax.random.split(key, 4)
    w_conv = jax.random.normal(k1, (KH, KW, C_IN, C_OUT), jnp.float32) * 0.1
    b_conv = jax.random.normal(k2, (C_OUT,), jnp.float32) * 0.01
    w_fc = jax.random.normal(k3, (C_OUT, 1), jnp.float32) * 0.1
    b_fc = jax.random.normal(k4, (1,), jnp.float32) * 0.01
    return (w_conv, b_conv, w_fc, b_fc)


if __name__ == "__main__":
    key = jax.random.PRNGKey(0)
    kx, kp = jax.random.split(key)
    x = jax.random.normal(kx, (B, C_IN, H, W), jnp.float32)
    params = init_params(kp)

    preds = jax.block_until_ready(regression_cnn_forward(x, params))   # (B, 1)
    ref = jax.block_until_ready(reference_forward(x, params))

    assert preds.shape == (B, 1)
    assert jnp.allclose(preds, ref, atol=1e-4, rtol=1e-4), (preds, ref)

    # wrapper-level evaluate(): MAE vs synthetic targets (host-side glue, like the PyTorch module)
    targets = jax.random.normal(jax.random.PRNGKey(1), (B,), jnp.float32)
    _mae = float(jnp.mean(jnp.abs(preds.flatten() - targets)))

    print("KERNEL_OK")
</pallas_src>

<mosaic_0001>
module attributes {stable_mosaic.version = 11 : i64} {
  func.func @regression_cnn_kernel(%arg0: i32, %arg1: memref<512x36xf32, #tpu.memory_space<vmem>>, %arg2: memref<36x128xf32, #tpu.memory_space<vmem>>, %arg3: memref<1x128xf32, #tpu.memory_space<vmem>>, %arg4: memref<1x128xf32, #tpu.memory_space<vmem>>, %arg5: memref<1x1xf32, #tpu.memory_space<smem>>, %arg6: memref<2x128xf32, #tpu.memory_space<vmem>>) attributes {dimension_semantics = [#tpu.dimension_semantics<arbitrary>], iteration_bounds = array<i64: 1>, scalar_prefetch = 0 : i64, scratch_operands = 0 : i64, tpu.core_type = #tpu.core_type<tc>, window_params = [{pipeline_mode = #tpu.pipeline_mode<synchronous>, transform_indices = @transform_0, window_bounds = array<i64: 512, 36>}, {pipeline_mode = #tpu.pipeline_mode<synchronous>, transform_indices = @transform_1, window_bounds = array<i64: 36, 128>}, {pipeline_mode = #tpu.pipeline_mode<synchronous>, transform_indices = @transform_2, window_bounds = array<i64: 1, 128>}, {pipeline_mode = #tpu.pipeline_mode<synchronous>, transform_indices = @transform_3, window_bounds = array<i64: 1, 128>}, {transform_indices = @transform_4, window_bounds = array<i64: 1, 1>}, {pipeline_mode = #tpu.pipeline_mode<synchronous>, transform_indices = @transform_5, window_bounds = array<i64: 2, 128>}]} {
    %c0 = arith.constant 0 : index
    %c0_0 = arith.constant 0 : index
    %0 = vector.load %arg1[%c0, %c0_0] : memref<512x36xf32, #tpu.memory_space<vmem>>, vector<512x36xf32>
    %c0_1 = arith.constant 0 : index
    %c0_2 = arith.constant 0 : index
    %1 = vector.load %arg2[%c0_1, %c0_2] : memref<36x128xf32, #tpu.memory_space<vmem>>, vector<36x128xf32>
    %cst = arith.constant dense<0.000000e+00> : vector<512x128xf32>
    %2 = tpu.matmul %0, %1, %cst {dimension_numbers = #tpu.dot_dimension_numbers<[1], [0], [0], [1], [0, 0, 1, 1], [], []>} : vector<512x36xf32>, vector<36x128xf32>, vector<512x128xf32> -> vector<512x128xf32>
    %c0_3 = arith.constant 0 : index
    %c0_4 = arith.constant 0 : index
    %3 = vector.load %arg3[%c0_3, %c0_4] : memref<1x128xf32, #tpu.memory_space<vmem>>, vector<1x128xf32>
    %4 = vector.broadcast %3 : vector<1x128xf32> to vector<512x128xf32>
    %5 = arith.addf %2, %4 : vector<512x128xf32>
    %cst_5 = arith.constant 0.000000e+00 : f32
    %6 = vector.broadcast %cst_5 : f32 to vector<512x128xf32>
    %7 = arith.maximumf %5, %6 : vector<512x128xf32>
    %8 = vector.shape_cast %7 : vector<512x128xf32> to vector<2x256x128xf32>
    %cst_6 = arith.constant dense<0.000000e+00> : vector<2x128xf32>
    %9 = vector.multi_reduction <add>, %8, %cst_6 [1] : vector<2x256x128xf32> to vector<2x128xf32>
    %c0_7 = arith.constant 0 : index
    %c0_8 = arith.constant 0 : index
    %10 = vector.load %arg4[%c0_7, %c0_8] : memref<1x128xf32, #tpu.memory_space<vmem>>, vector<1x128xf32>
    %11 = vector.broadcast %10 : vector<1x128xf32> to vector<2x128xf32>
    %12 = arith.mulf %9, %11 : vector<2x128xf32>
    %cst_9 = arith.constant dense<0.000000e+00> : vector<2xf32>
    %13 = vector.multi_reduction <add>, %12, %cst_9 [1] : vector<2x128xf32> to vector<2xf32>
    %14 = vector.shape_cast %13 : vector<2xf32> to vector<2x1xf32>
    %c0_10 = arith.constant 0 : index
    %c0_11 = arith.constant 0 : index
    %15 = memref.load %arg5[%c0_10, %c0_11] : memref<1x1xf32, #tpu.memory_space<smem>>
    %16 = vector.broadcast %15 : f32 to vector<2x1xf32>
    %17 = arith.addf %14, %16 : vector<2x1xf32>
    %18 = vector.shape_cast %17 : vector<2x1xf32> to vector<2x1xf32>
    %19 = vector.broadcast %18 : vector<2x1xf32> to vector<2x128xf32>
    %c0_12 = arith.constant 0 : index
    %c0_13 = arith.constant 0 : index
    %20 = vector.load %arg6[%c0_12, %c0_13] : memref<2x128xf32, #tpu.memory_space<vmem>>, vector<2x128xf32>
    tpu.vector_store %arg6[%c0_12, %c0_13], %19 {strides = array<i32>} : memref<2x128xf32, #tpu.memory_space<vmem>>, vector<2x128xf32>,
    return
  }
  func.func @transform_0(%arg0: i32) -> (i32, i32) {
    %c0_i32 = arith.constant 0 : i32
    %c0_i32_0 = arith.constant 0 : i32
    %c0_i32_1 = arith.constant 0 : i32
    return %c0_i32, %c0_i32_0 : i32, i32
  }
  func.func @transform_1(%arg0: i32) -> (i32, i32) {
    %c0_i32 = arith.constant 0 : i32
    %c0_i32_0 = arith.constant 0 : i32
    %c0_i32_1 = arith.constant 0 : i32
    return %c0_i32, %c0_i32_0 : i32, i32
  }
  func.func @transform_2(%arg0: i32) -> (i32, i32) {
    %c0_i32 = arith.constant 0 : i32
    %c0_i32_0 = arith.constant 0 : i32
    %c0_i32_1 = arith.constant 0 : i32
    return %c0_i32, %c0_i32_0 : i32, i32
  }
  func.func @transform_3(%arg0: i32) -> (i32, i32) {
    %c0_i32 = arith.constant 0 : i32
    %c0_i32_0 = arith.constant 0 : i32
    %c0_i32_1 = arith.constant 0 : i32
    return %c0_i32, %c0_i32_0 : i32, i32
  }
  func.func @transform_4(%arg0: i32) -> (i32, i32) {
    %c0_i32 = arith.constant 0 : i32
    %c0_i32_0 = arith.constant 0 : i32
    %c0_i32_1 = arith.constant 0 : i32
    return %c0_i32, %c0_i32_0 : i32, i32
  }
  func.func @transform_5(%arg0: i32) -> (i32, i32) {
    %c0_i32 = arith.constant 0 : i32
    %c0_i32_0 = arith.constant 0 : i32
    %c0_i32_1 = arith.constant 0 : i32
    return %c0_i32, %c0_i32_0 : i32, i32
  }
}

</mosaic_0001>

<llo_original>
// kernel: regression_cnn_forward.1
$region0: #{regression_cnn_forward.1}
  #allocation0 [shape = 'u32[]', space=smem, size = 0x4, offset = 0x4, fixed_abs, tag = 'smem constant byte address 0x4 - core index']
  #allocation1 [shape = 'u32[144,128]{1,0:T(1,128)}', space=vmem, size = 0x12000, scoped, tag = 'internal scratch']
  #allocation2 [shape = 'f32[1,1]{1,0:T(1,128)S(6)}', space=smem, size = 0x200, scoped, tag = 'scoped memory for regression_cnn_forward.1']
  %s0 = inlined_call_operand.vmem [shape: f32[512,36], index: 0, kind: input, shape index: {}]
  %s1 = inlined_call_operand.vmem [shape: f32[36,128], index: 1, kind: input, shape index: {}]
  %s2 = inlined_call_operand.vmem [shape: f32[1,128], index: 2, kind: input, shape index: {}]
  %s3 = inlined_call_operand.vmem [shape: f32[1,128], index: 3, kind: input, shape index: {}]
  %s4 = inlined_call_operand.<no memory space> [shape: f32[1,1], index: 4, kind: input, shape index: {}]
  %s5 = inlined_call_operand.vmem [shape: f32[2,128], index: 5, kind: output, shape index: {}]
  %s6 = sld [smem:[#allocation0]]
  $region30: #{regression_cnn_forward.1} parent=0
    _
  %s8 = ssub.s32 1, %s6
  %s9 = scalar_select 0, %s8, %s6
  %10 = sst [smem:[#allocation2]] %s4
  // Predicated region
  $region2: #{regression_cnn_forward.1} parent=0 // pred_check
    _
  $region3: #{regression_cnn_forward.1} parent=0 // pred_check_branch
    %12 = sbr.rel (0) target = $region5
  $region4: #{regression_cnn_forward.1} parent=0 // pred_region
    _
  $region5: #{regression_cnn_forward.1} parent=0 // pred_fallthru
    _
  // Predicated region
  $region6: #{regression_cnn_forward.1} parent=0 // pred_check
    _
  $region7: #{regression_cnn_forward.1} parent=0 // pred_check_branch
    %14 = sbr.rel (0) target = $region9
  $region8: #{regression_cnn_forward.1} parent=0 // pred_region
    _
  $region9: #{regression_cnn_forward.1} parent=0 // pred_fallthru
    _
  // Predicated region
  $region10: #{regression_cnn_forward.1} parent=0 // pred_check
    _
  $region11: #{regression_cnn_forward.1} parent=0 // pred_check_branch
    %16 = sbr.rel (0) target = $region13
  $region12: #{regression_cnn_forward.1} parent=0 // pred_region
    _
  $region13: #{regression_cnn_forward.1} parent=0 // pred_fallthru
    _
  // Predicated region
  $region14: #{regression_cnn_forward.1} parent=0 // pred_check
    _
  $region15: #{regression_cnn_forward.1} parent=0 // pred_check_branch
    %18 = sbr.rel (0) target = $region17
  $region16: #{regression_cnn_forward.1} parent=0 // pred_region
    _
  $region17: #{regression_cnn_forward.1} parent=0 // pred_fallthru
    _
  // Predicated region
  $region18: #{regression_cnn_forward.1} parent=0 // pred_check
    _
  $region19: #{regression_cnn_forward.1} parent=0 // pred_check_branch
    %20 = sbr.rel (0) target = $region21
  $region20: #{regression_cnn_forward.1} parent=0 // pred_region
    _
  $region21: #{regression_cnn_forward.1} parent=0 // pred_fallthru
    _
  %v21 = vld [vmem:[%s0] sm:$0xff]
  %v22 = vld [vmem:[%s0 + $0x8] sm:$0xff]
  %v23 = vld [vmem:[%s0 + $0x10] sm:$0xff]
  %v24 = vld [vmem:[%s0 + $0x18] sm:$0xff]
  %v25 = vld [vmem:[%s0 + $0x20] sm:$0xff]
  %v26 = vld [vmem:[%s0 + $0x28] sm:$0xff]
  %v27 = vld [vmem:[%s0 + $0x30] sm:$0xff]
  %v28 = vld [vmem:[%s0 + $0x38] sm:$0xff]
  %v29 = vld [vmem:[%s0 + $0x40] sm:$0xff]
  %v30 = vld [vmem:[%s0 + $0x48] sm:$0xff]
  %v31 = vld [vmem:[%s0 + $0x50] sm:$0xff]
  %v32 = vld [vmem:[%s0 + $0x58] sm:$0xff]
  %v33 = vld [vmem:[%s0 + $0x60] sm:$0xff]
  %v34 = vld [vmem:[%s0 + $0x68] sm:$0xff]
  %v35 = vld [vmem:[%s0 + $0x70] sm:$0xff]
  %v36 = vld [vmem:[%s0 + $0x78] sm:$0xff]
  %v37 = vld [vmem:[%s0 + $0x80] sm:$0xff]
  %v38 = vld [vmem:[%s0 + $0x88] sm:$0xff]
  %v39 = vld [vmem:[%s0 + $0x90] sm:$0xff]
  %v40 = vld [vmem:[%s0 + $0x98] sm:$0xff]
  %v41 = vld [vmem:[%s0 + $0xa0] sm:$0xff]
  %v42 = vld [vmem:[%s0 + $0xa8] sm:$0xff]
  %v43 = vld [vmem:[%s0 + $0xb0] sm:$0xff]
  %v44 = vld [vmem:[%s0 + $0xb8] sm:$0xff]
  %v45 = vld [vmem:[%s0 + $0xc0] sm:$0xff]
  %v46 = vld [vmem:[%s0 + $0xc8] sm:$0xff]
  %v47 = vld [vmem:[%s0 + $0xd0] sm:$0xff]
  %v48 = vld [vmem:[%s0 + $0xd8] sm:$0xff]
  %v49 = vld [vmem:[%s0 + $0xe0] sm:$0xff]
  %v50 = vld [vmem:[%s0 + $0xe8] sm:$0xff]
  %v51 = vld [vmem:[%s0 + $0xf0] sm:$0xff]
  %v52 = vld [vmem:[%s0 + $0xf8] sm:$0xff]
  %v53 = vld [vmem:[%s0 + $0x100] sm:$0xff]
  %v54 = vld [vmem:[%s0 + $0x108] sm:$0xff]
  %v55 = vld [vmem:[%s0 + $0x110] sm:$0xff]
  %v56 = vld [vmem:[%s0 + $0x118] sm:$0xff]
  %v57 = vld [vmem:[%s0 + $0x120] sm:$0xff]
  %v58 = vld [vmem:[%s0 + $0x128] sm:$0xff]
  %v59 = vld [vmem:[%s0 + $0x130] sm:$0xff]
  %v60 = vld [vmem:[%s0 + $0x138] sm:$0xff]
  %v61 = vld [vmem:[%s0 + $0x140] sm:$0xff]
  %v62 = vld [vmem:[%s0 + $0x148] sm:$0xff]
  %v63 = vld [vmem:[%s0 + $0x150] sm:$0xff]
  %v64 = vld [vmem:[%s0 + $0x158] sm:$0xff]
  %v65 = vld [vmem:[%s0 + $0x160] sm:$0xff]
  %v66 = vld [vmem:[%s0 + $0x168] sm:$0xff]
  %v67 = vld [vmem:[%s0 + $0x170] sm:$0xff]
  %v68 = vld [vmem:[%s0 + $0x178] sm:$0xff]
  %v69 = vld [vmem:[%s0 + $0x180] sm:$0xff]
  %v70 = vld [vmem:[%s0 + $0x188] sm:$0xff]
  %v71 = vld [vmem:[%s0 + $0x190] sm:$0xff]
  %v72 = vld [vmem:[%s0 + $0x198] sm:$0xff]
  %v73 = vld [vmem:[%s0 + $0x1a0] sm:$0xff]
  %v74 = vld [vmem:[%s0 + $0x1a8] sm:$0xff]
  %v75 = vld [vmem:[%s0 + $0x1b0] sm:$0xff]
  %v76 = vld [vmem:[%s0 + $0x1b8] sm:$0xff]
  %v77 = vld [vmem:[%s0 + $0x1c0] sm:$0xff]
  %v78 = vld [vmem:[%s0 + $0x1c8] sm:$0xff]
  %v79 = vld [vmem:[%s0 + $0x1d0] sm:$0xff]
  %v80 = vld [vmem:[%s0 + $0x1d8] sm:$0xff]
  %v81 = vld [vmem:[%s0 + $0x1e0] sm:$0xff]
  %v82 = vld [vmem:[%s0 + $0x1e8] sm:$0xff]
  %v83 = vld [vmem:[%s0 + $0x1f0] sm:$0xff]
  %v84 = vld [vmem:[%s0 + $0x1f8] sm:$0xff]
  %v85 = vld [vmem:[%s1] sm:$0xff]
  %v86 = vld [vmem:[%s1 + $0x8] sm:$0xff]
  %v87 = vld [vmem:[%s1 + $0x10] sm:$0xff]
  %v88 = vld [vmem:[%s1 + $0x18] sm:$0xff]
  %v89 = vld [vmem:[%s1 + $0x20] sm:$0xf]
  %v90 = vld [vmem:[%s2] sm:$0x1]
  %v92 = vlaneseq
  %v93 = vshrl.u32 %v92, 7
  %v94 = vsub.s32 0, %v93
  %v95 = vrot.slane %v90, %v94
  %vm97 = vcmask 293888
  %v99 = vsel %vm97, %v21, 0
  %v102 = vsel %vm97, %v22, 0
  %v105 = vsel %vm97, %v23, 0
  %v108 = vsel %vm97, %v24, 0
  %v111 = vsel %vm97, %v25, 0
  %v114 = vsel %vm97, %v26, 0
  %v117 = vsel %vm97, %v27, 0
  %v120 = vsel %vm97, %v28, 0
  %v123 = vsel %vm97, %v29, 0
  %v126 = vsel %vm97, %v30, 0
  %v129 = vsel %vm97, %v31, 0
  %v132 = vsel %vm97, %v32, 0
  %v135 = vsel %vm97, %v33, 0
  %v138 = vsel %vm97, %v34, 0
  %v141 = vsel %vm97, %v35, 0
  %v144 = vsel %vm97, %v36, 0
  %v147 = vsel %vm97, %v37, 0
  %v150 = vsel %vm97, %v38, 0
  %v153 = vsel %vm97, %v39, 0
  %v156 = vsel %vm97, %v40, 0
  %v159 = vsel %vm97, %v41, 0
  %v162 = vsel %vm97, %v42, 0
  %v165 = vsel %vm97, %v43, 0
  %v168 = vsel %vm97, %v44, 0
  %v171 = vsel %vm97, %v45, 0
  %v174 = vsel %vm97, %v46, 0
  %v177 = vsel %vm97, %v47, 0
  %v180 = vsel %vm97, %v48, 0
  %v183 = vsel %vm97, %v49, 0
  %v186 = vsel %vm97, %v50, 0
  %v189 = vsel %vm97, %v51, 0
  %v192 = vsel %vm97, %v52, 0
  %v195 = vsel %vm97, %v53, 0
  %v198 = vsel %vm97, %v54, 0
  %v201 = vsel %vm97, %v55, 0
  %v204 = vsel %vm97, %v56, 0
  %v207 = vsel %vm97, %v57, 0
  %v210 = vsel %vm97, %v58, 0
  %v213 = vsel %vm97, %v59, 0
  %v216 = vsel %vm97, %v60, 0
  %v219 = vsel %vm97, %v61, 0
  %v222 = vsel %vm97, %v62, 0
  %v225 = vsel %vm97, %v63, 0
  %v228 = vsel %vm97, %v64, 0
  %v231 = vsel %vm97, %v65, 0
  %v234 = vsel %vm97, %v66, 0
  %v237 = vsel %vm97, %v67, 0
  %v240 = vsel %vm97, %v68, 0
  %v243 = vsel %vm97, %v69, 0
  %v246 = vsel %vm97, %v70, 0
  %v249 = vsel %vm97, %v71, 0
  %v252 = vsel %vm97, %v72, 0
  %v255 = vsel %vm97, %v73, 0
  %v258 = vsel %vm97, %v74, 0
  %v261 = vsel %vm97, %v75, 0
  %v264 = vsel %vm97, %v76, 0
  %v267 = vsel %vm97, %v77, 0
  %v270 = vsel %vm97, %v78, 0
  %v273 = vsel %vm97, %v79, 0
  %v276 = vsel %vm97, %v80, 0
  %v279 = vsel %vm97, %v81, 0
  %v282 = vsel %vm97, %v82, 0
  %v285 = vsel %vm97, %v83, 0
  %v288 = vsel %vm97, %v84, 0
  %vm290 = vcmask 1043456
  %v292 = vsel %vm290, %v89, 0
  %294 = vmatprep.subr.mxu0 0.0
  %295 = vmatpush1.msra.mxu0 %v85
  %296 = vmatprep.subr.mxu0 0.0
  %297 = vmatpush1.msra.mxu0 %v86
  %298 = vmatprep.subr.mxu0 0.0
  %299 = vmatpush1.msra.mxu0 %v87
  %300 = vmatprep.subr.mxu0 0.0
  %301 = vmatpush1.msra.mxu0 %v88
  %302 = vmatprep.subr.mxu0 0.0
  %303 = vmatpush1.msra.mxu0 %v292
  %304 = vmatprep.subr.mxu0 0.0
  %305 = vmatpush1.msra.mxu0 0.0
  %306 = vmatprep.subr.mxu0 0.0
  %307 = vmatpush1.msra.mxu0 0.0
  %308 = vmatprep.subr.mxu0 0.0
  %309 = vmatpush1.msra.mxu0 0.0
  %310 = vmatprep.subr.mxu0 0.0
  %311 = vmatpush1.msra.mxu0 0.0
  %312 = vmatprep.subr.mxu0 0.0
  %313 = vmatpush1.msra.mxu0 0.0
  %314 = vmatprep.subr.mxu0 0.0
  %315 = vmatpush1.msra.mxu0 0.0
  %316 = vmatprep.subr.mxu0 0.0
  %317 = vmatpush1.msra.mxu0 0.0
  %318 = vmatprep.subr.mxu0 0.0
  %319 = vmatpush1.msra.mxu0 0.0
  %320 = vmatprep.subr.mxu0 0.0
  %321 = vmatpush1.msra.mxu0 0.0
  %322 = vmatprep.subr.mxu0 0.0
  %323 = vmatpush1.msra.mxu0 0.0
  %324 = vmatprep.subr.mxu0 0.0
  %325 = vmatpush1.msra.mxu0 0.0
  %326 = vmatprep.subr.mxu0 0.0
  %327 = vmatpush1.msra.mxu0 0.0
  %328 = vmatprep.subr.mxu0 0.0
  %329 = vmatpush1.msra.mxu0 0.0
  %330 = vmatprep.subr.mxu0 0.0
  %331 = vmatpush1.msra.mxu0 0.0
  %332 = vmatprep.subr.mxu0 0.0
  %333 = vmatpush1.msra.mxu0 0.0
  %334 = vmatprep.subr.mxu0 0.0
  %335 = vmatpush1.msra.mxu0 0.0
  %336 = vmatprep.subr.mxu0 0.0
  %337 = vmatpush1.msra.mxu0 0.0
  %338 = vmatprep.subr.mxu0 0.0
  %339 = vmatpush1.msra.mxu0 0.0
  %340 = vmatprep.subr.mxu0 0.0
  %341 = vmatpush1.msra.mxu0 0.0
  %342 = vmatprep.subr.mxu0 0.0
  %343 = vmatpush1.msra.mxu0 0.0
  %344 = vmatprep.subr.mxu0 0.0
  %345 = vmatpush1.msra.mxu0 0.0
  %346 = vmatprep.subr.mxu0 0.0
  %347 = vmatpush1.msra.mxu0 0.0
  %348 = vmatprep.subr.mxu0 0.0
  %349 = vmatpush1.msra.mxu0 0.0
  %350 = vmatprep.subr.mxu0 0.0
  %351 = vmatpush1.msra.mxu0 0.0
  %352 = vmatprep.subr.mxu0 0.0
  %353 = vmatpush1.msra.mxu0 0.0
  %354 = vmatprep.subr.mxu0 0.0
  %355 = vmatpush1.msra.mxu0 0.0
  %356 = vmatprep.subr.mxu0 0.0
  %357 = vmatpush1.msra.mxu0 0.0
  %358 = vmatprep.mubr.f32.mxu0 0.0
  %359 = vmatmul.mubr.f32.gmra.mrb[0].mxu0 %v99
  %v360 = vpop.f32.mrb[0].mxu0
  %v361 = vadd.f32 %v95, %v360
  %v362 = vpop.f32.mrb[0].mxu0
  %363 = vmatprep.mubr.f32.mxu0 0.0
  %364 = vmatmul.mubr.f32.gmra.mrb[0].mxu0 %v102
  %v365 = vpop.f32.mrb[0].mxu0
  %v366 = vadd.f32 %v95, %v365
  %v367 = vpop.f32.mrb[0].mxu0
  %368 = vmatprep.mubr.f32.mxu0 0.0
  %369 = vmatmul.mubr.f32.gmra.mrb[0].mxu0 %v105
  %v370 = vpop.f32.mrb[0].mxu0
  %v371 = vadd.f32 %v95, %v370
  %v372 = vpop.f32.mrb[0].mxu0
  %373 = vmatprep.mubr.f32.mxu0 0.0
  %374 = vmatmul.mubr.f32.gmra.mrb[0].mxu0 %v108
  %v375 = vpop.f32.mrb[0].mxu0
  %v376 = vadd.f32 %v95, %v375
  %v377 = vpop.f32.mrb[0].mxu0
  %378 = vmatprep.mubr.f32.mxu0 0.0
  %379 = vmatmul.mubr.f32.gmra.mrb[0].mxu0 %v111
  %v380 = vpop.f32.mrb[0].mxu0
  %v381 = vadd.f32 %v95, %v380
  %v382 = vpop.f32.mrb[0].mxu0
  %383 = vmatprep.mubr.f32.mxu0 0.0
  %384 = vmatmul.mubr.f32.gmra.mrb[0].mxu0 %v114
  %v385 = vpop.f32.mrb[0].mxu0
  %v386 = vadd.f32 %v95, %v385
  %v387 = vpop.f32.mrb[0].mxu0
  %388 = vmatprep.mubr.f32.mxu0 0.0
  %389 = vmatmul.mubr.f32.gmra.mrb[0].mxu0 %v117
  %v390 = vpop.f32.mrb[0].mxu0
  %v391 = vadd.f32 %v95, %v390
  %v392 = vpop.f32.mrb[0].mxu0
  %393 = vmatprep.mubr.f32.mxu0 0.0
  %394 = vmatmul.mubr.f32.gmra.mrb[0].mxu0 %v120
  %v395 = vpop.f32.mrb[0].mxu0
  %v396 = vadd.f32 %v95, %v395
  %v397 = vpop.f32.mrb[0].mxu0
  %398 = vmatprep.mubr.f32.mxu0 0.0
  %399 = vmatmul.mubr.f32.gmra.mrb[0].mxu0 %v123
  %v400 = vpop.f32.mrb[0].mxu0
  %v401 = vadd.f32 %v95, %v400
  %v402 = vpop.f32.mrb[0].mxu0
  %403 = vmatprep.mubr.f32.mxu0 0.0
  %404 = vmatmul.mubr.f32.gmra.mrb[0].mxu0 %v126
  %v405 = vpop.f32.mrb[0].mxu0
  %v406 = vadd.f32 %v95, %v405
  %v407 = vpop.f32.mrb[0].mxu0
  %408 = vmatprep.mubr.f32.mxu0 0.0
  %409 = vmatmul.mubr.f32.gmra.mrb[0].mxu0 %v129
  %v410 = vpop.f32.mrb[0].mxu0
  %v411 = vadd.f32 %v95, %v410
  %v412 = vpop.f32.mrb[0].mxu0
  %413 = vmatprep.mubr.f32.mxu0 0.0
  %414 = vmatmul.mubr.f32.gmra.mrb[0].mxu0 %v132
  %v415 = vpop.f32.mrb[0].mxu0
  %v416 = vadd.f32 %v95, %v415
  %v417 = vpop.f32.mrb[0].mxu0
  %418 = vmatprep.mubr.f32.mxu0 0.0
  %419 = vmatmul.mubr.f32.gmra.mrb[0].mxu0 %v135
  %v420 = vpop.f32.mrb[0].mxu0
  %v421 = vadd.f32 %v95, %v420
  %v422 = vpop.f32.mrb[0].mxu0
  %423 = vmatprep.mubr.f32.mxu0 0.0
  %424 = vmatmul.mubr.f32.gmra.mrb[0].mxu0 %v138
  %v425 = vpop.f32.mrb[0].mxu0
  %v426 = vadd.f32 %v95, %v425
  %v427 = vpop.f32.mrb[0].mxu0
  %428 = vmatprep.mubr.f32.mxu0 0.0
  %429 = vmatmul.mubr.f32.gmra.mrb[0].mxu0 %v141
  %v430 = vpop.f32.mrb[0].mxu0
  %v431 = vadd.f32 %v95, %v430
  %v432 = vpop.f32.mrb[0].mxu0
  %433 = vmatprep.mubr.f32.mxu0 0.0
  %434 = vmatmul.mubr.f32.gmra.mrb[0].mxu0 %v144
  %v435 = vpop.f32.mrb[0].mxu0
  %v436 = vadd.f32 %v95, %v435
  %v437 = vpop.f32.mrb[0].mxu0
  %438 = vmatprep.mubr.f32.mxu0 0.0
  %439 = vmatmul.mubr.f32.gmra.mrb[0].mxu0 %v147
  %v440 = vpop.f32.mrb[0].mxu0
  %v441 = vadd.f32 %v95, %v440
  %v442 = vpop.f32.mrb[0].mxu0
  %443 = vmatprep.mubr.f32.mxu0 0.0
  %444 = vmatmul.mubr.f32.gmra.mrb[0].mxu0 %v150
  %v445 = vpop.f32.mrb[0].mxu0
  %v446 = vadd.f32 %v95, %v445
  %v447 = vpop.f32.mrb[0].mxu0
  %448 = vmatprep.mubr.f32.mxu0 0.0
  %449 = vmatmul.mubr.f32.gmra.mrb[0].mxu0 %v153
  %v450 = vpop.f32.mrb[0].mxu0
  %v451 = vadd.f32 %v95, %v450
  %v452 = vpop.f32.mrb[0].mxu0
  %453 = vmatprep.mubr.f32.mxu0 0.0
  %454 = vmatmul.mubr.f32.gmra.mrb[0].mxu0 %v156
  %v455 = vpop.f32.mrb[0].mxu0
  %v456 = vadd.f32 %v95, %v455
  %v457 = vpop.f32.mrb[0].mxu0
  %458 = vmatprep.mubr.f32.mxu0 0.0
  %459 = vmatmul.mubr.f32.gmra.mrb[0].mxu0 %v159
  %v460 = vpop.f32.mrb[0].mxu0
  %v461 = vadd.f32 %v95, %v460
  %v462 = vpop.f32.mrb[0].mxu0
  %463 = vmatprep.mubr.f32.mxu0 0.0
  %464 = vmatmul.mubr.f32.gmra.mrb[0].mxu0 %v162
  %v465 = vpop.f32.mrb[0].mxu0
  %v466 = vadd.f32 %v95, %v465
  %v467 = vpop.f32.mrb[0].mxu0
  %468 = vmatprep.mubr.f32.mxu0 0.0
  %469 = vmatmul.mubr.f32.gmra.mrb[0].mxu0 %v165
  %v470 = vpop.f32.mrb[0].mxu0
  %v471 = vadd.f32 %v95, %v470
  %v472 = vpop.f32.mrb[0].mxu0
  %473 = vmatprep.mubr.f32.mxu0 0.0
  %474 = vmatmul.mubr.f32.gmra.mrb[0].mxu0 %v168
  %v475 = vpop.f32.mrb[0].mxu0
  %v476 = vadd.f32 %v95, %v475
  %v477 = vpop.f32.mrb[0].mxu0
  %478 = vmatprep.mubr.f32.mxu0 0.0
  %479 = vmatmul.mubr.f32.gmra.mrb[0].mxu0 %v171
  %v480 = vpop.f32.mrb[0].mxu0
  %v481 = vadd.f32 %v95, %v480
  %v482 = vpop.f32.mrb[0].mxu0
  %483 = vmatprep.mubr.f32.mxu0 0.0
  %484 = vmatmul.mubr.f32.gmra.mrb[0].mxu0 %v174
  %v485 = vpop.f32.mrb[0].mxu0
  %v486 = vadd.f32 %v95, %v485
  %v487 = vpop.f32.mrb[0].mxu0
  %488 = vmatprep.mubr.f32.mxu0 0.0
  %489 = vmatmul.mubr.f32.gmra.mrb[0].mxu0 %v177
  %v490 = vpop.f32.mrb[0].mxu0
  %v491 = vadd.f32 %v95, %v490
  %v492 = vpop.f32.mrb[0].mxu0
  %493 = vmatprep.mubr.f32.mxu0 0.0
  %494 = vmatmul.mubr.f32.gmra.mrb[0].mxu0 %v180
  %v495 = vpop.f32.mrb[0].mxu0
  %v496 = vadd.f32 %v95, %v495
  %v497 = vpop.f32.mrb[0].mxu0
  %498 = vmatprep.mubr.f32.mxu0 0.0
  %499 = vmatmul.mubr.f32.gmra.mrb[0].mxu0 %v183
  %v500 = vpop.f32.mrb[0].mxu0
  %v501 = vadd.f32 %v95, %v500
  %v502 = vpop.f32.mrb[0].mxu0
  %503 = vmatprep.mubr.f32.mxu0 0.0
  %504 = vmatmul.mubr.f32.gmra.mrb[0].mxu0 %v186
  %v505 = vpop.f32.mrb[0].mxu0
  %v506 = vadd.f32 %v95, %v505
  %v507 = vpop.f32.mrb[0].mxu0
  %508 = vmatprep.mubr.f32.mxu0 0.0
  %509 = vmatmul.mubr.f32.gmra.mrb[0].mxu0 %v189
  %v510 = vpop.f32.mrb[0].mxu0
  %v511 = vadd.f32 %v95, %v510
  %v512 = vpop.f32.mrb[0].mxu0
  %513 = vmatprep.mubr.f32.mxu0 0.0
  %514 = vmatmul.mubr.f32.gmra.mrb[0].mxu0 %v192
  %v515 = vpop.f32.mrb[0].mxu0
  %v516 = vadd.f32 %v95, %v515
  %v517 = vpop.f32.mrb[0].mxu0
  %518 = vmatprep.mubr.f32.mxu0 0.0
  %519 = vmatmul.mubr.f32.gmra.mrb[0].mxu0 %v195
  %v520 = vpop.f32.mrb[0].mxu0
  %v521 = vadd.f32 %v95, %v520
  %v522 = vpop.f32.mrb[0].mxu0
  %523 = vmatprep.mubr.f32.mxu0 0.0
  %524 = vmatmul.mubr.f32.gmra.mrb[0].mxu0 %v198
  %v525 = vpop.f32.mrb[0].mxu0
  %v526 = vadd.f32 %v95, %v525
  %v527 = vpop.f32.mrb[0].mxu0
  %528 = vmatprep.mubr.f32.mxu0 0.0
  %529 = vmatmul.mubr.f32.gmra.mrb[0].mxu0 %v201
  %v530 = vpop.f32.mrb[0].mxu0
  %v531 = vadd.f32 %v95, %v530
  %v532 = vpop.f32.mrb[0].mxu0
  %533 = vmatprep.mubr.f32.mxu0 0.0
  %534 = vmatmul.mubr.f32.gmra.mrb[0].mxu0 %v204
  %v535 = vpop.f32.mrb[0].mxu0
  %v536 = vadd.f32 %v95, %v535
  %v537 = vpop.f32.mrb[0].mxu0
  %538 = vmatprep.mubr.f32.mxu0 0.0
  %539 = vmatmul.mubr.f32.gmra.mrb[0].mxu0 %v207
  %v540 = vpop.f32.mrb[0].mxu0
  %v541 = vadd.f32 %v95, %v540
  %v542 = vpop.f32.mrb[0].mxu0
  %543 = vmatprep.mubr.f32.mxu0 0.0
  %544 = vmatmul.mubr.f32.gmra.mrb[0].mxu0 %v210
  %v545 = vpop.f32.mrb[0].mxu0
  %v546 = vadd.f32 %v95, %v545
  %v547 = vpop.f32.mrb[0].mxu0
  %548 = vmatprep.mubr.f32.mxu0 0.0
  %549 = vmatmul.mubr.f32.gmra.mrb[0].mxu0 %v213
  %v550 = vpop.f32.mrb[0].mxu0
  %v551 = vadd.f32 %v95, %v550
  %v552 = vpop.f32.mrb[0].mxu0
  %553 = vmatprep.mubr.f32.mxu0 0.0
  %554 = vmatmul.mubr.f32.gmra.mrb[0].mxu0 %v216
  %v555 = vpop.f32.mrb[0].mxu0
  %v556 = vadd.f32 %v95, %v555
  %v557 = vpop.f32.mrb[0].mxu0
  %558 = vmatprep.mubr.f32.mxu0 0.0
  %559 = vmatmul.mubr.f32.gmra.mrb[0].mxu0 %v219
  %v560 = vpop.f32.mrb[0].mxu0
  %v561 = vadd.f32 %v95, %v560
  %v562 = vpop.f32.mrb[0].mxu0
  %563 = vmatprep.mubr.f32.mxu0 0.0
  %564 = vmatmul.mubr.f32.gmra.mrb[0].mxu0 %v222
  %v565 = vpop.f32.mrb[0].mxu0
  %v566 = vadd.f32 %v95, %v565
  %v567 = vpop.f32.mrb[0].mxu0
  %568 = vmatprep.mubr.f32.mxu0 0.0
  %569 = vmatmul.mubr.f32.gmra.mrb[0].mxu0 %v225
  %v570 = vpop.f32.mrb[0].mxu0
  %v571 = vadd.f32 %v95, %v570
  %v572 = vpop.f32.mrb[0].mxu0
  %573 = vmatprep.mubr.f32.mxu0 0.0
  %574 = vmatmul.mubr.f32.gmra.mrb[0].mxu0 %v228
  %v575 = vpop.f32.mrb[0].mxu0
  %v576 = vadd.f32 %v95, %v575
  %v577 = vpop.f32.mrb[0].mxu0
  %578 = vmatprep.mubr.f32.mxu0 0.0
  %579 = vmatmul.mubr.f32.gmra.mrb[0].mxu0 %v231
  %v580 = vpop.f32.mrb[0].mxu0
  %v581 = vadd.f32 %v95, %v580
  %v582 = vpop.f32.mrb[0].mxu0
  %583 = vmatprep.mubr.f32.mxu0 0.0
  %584 = vmatmul.mubr.f32.gmra.mrb[0].mxu0 %v234
  %v585 = vpop.f32.mrb[0].mxu0
  %v586 = vadd.f32 %v95, %v585
  %v587 = vpop.f32.mrb[0].mxu0
  %588 = vmatprep.mubr.f32.mxu0 0.0
  %589 = vmatmul.mubr.f32.gmra.mrb[0].mxu0 %v237
  %v590 = vpop.f32.mrb[0].mxu0
  %v591 = vadd.f32 %v95, %v590
  %v592 = vpop.f32.mrb[0].mxu0
  %593 = vmatprep.mubr.f32.mxu0 0.0
  %594 = vmatmul.mubr.f32.gmra.mrb[0].mxu0 %v240
  %v595 = vpop.f32.mrb[0].mxu0
  %v596 = vadd.f32 %v95, %v595
  %v597 = vpop.f32.mrb[0].mxu0
  %598 = vmatprep.mubr.f32.mxu0 0.0
  %599 = vmatmul.mubr.f32.gmra.mrb[0].mxu0 %v243
  %v600 = vpop.f32.mrb[0].mxu0
  %v601 = vadd.f32 %v95, %v600
  %v602 = vpop.f32.mrb[0].mxu0
  %603 = vmatprep.mubr.f32.mxu0 0.0
  %604 = vmatmul.mubr.f32.gmra.mrb[0].mxu0 %v246
  %v605 = vpop.f32.mrb[0].mxu0
  %v606 = vadd.f32 %v95, %v605
  %v607 = vpop.f32.mrb[0].mxu0
  %608 = vmatprep.mubr.f32.mxu0 0.0
  %609 = vmatmul.mubr.f32.gmra.mrb[0].mxu0 %v249
  %v610 = vpop.f32.mrb[0].mxu0
  %v611 = vadd.f32 %v95, %v610
  %v612 = vpop.f32.mrb[0].mxu0
  %613 = vmatprep.mubr.f32.mxu0 0.0
  %614 = vmatmul.mubr.f32.gmra.mrb[0].mxu0 %v252
  %v615 = vpop.f32.mrb[0].mxu0
  %v616 = vadd.f32 %v95, %v615
  %v617 = vpop.f32.mrb[0].mxu0
  %618 = vmatprep.mubr.f32.mxu0 0.0
  %619 = vmatmul.mubr.f32.gmra.mrb[0].mxu0 %v255
  %v620 = vpop.f32.mrb[0].mxu0
  %v621 = vadd.f32 %v95, %v620
  %v622 = vpop.f32.mrb[0].mxu0
  %623 = vmatprep.mubr.f32.mxu0 0.0
  %624 = vmatmul.mubr.f32.gmra.mrb[0].mxu0 %v258
  %v625 = vpop.f32.mrb[0].mxu0
  %v626 = vadd.f32 %v95, %v625
  %v627 = vpop.f32.mrb[0].mxu0
  %628 = vmatprep.mubr.f32.mxu0 0.0
  %629 = vmatmul.mubr.f32.gmra.mrb[0].mxu0 %v261
  %v630 = vpop.f32.mrb[0].mxu0
  %v631 = vadd.f32 %v95, %v630
  %v632 = vpop.f32.mrb[0].mxu0
  %633 = vmatprep.mubr.f32.mxu0 0.0
  %634 = vmatmul.mubr.f32.gmra.mrb[0].mxu0 %v264
  %v635 = vpop.f32.mrb[0].mxu0
  %v636 = vadd.f32 %v95, %v635
  %v637 = vpop.f32.mrb[0].mxu0
  %638 = vmatprep.mubr.f32.mxu0 0.0
  %639 = vmatmul.mubr.f32.gmra.mrb[0].mxu0 %v267
  %v640 = vpop.f32.mrb[0].mxu0
  %v641 = vadd.f32 %v95, %v640
  %v642 = vpop.f32.mrb[0].mxu0
  %643 = vmatprep.mubr.f32.mxu0 0.0
  %644 = vmatmul.mubr.f32.gmra.mrb[0].mxu0 %v270
  %v645 = vpop.f32.mrb[0].mxu0
  %v646 = vadd.f32 %v95, %v645
  %v647 = vpop.f32.mrb[0].mxu0
  %648 = vmatprep.mubr.f32.mxu0 0.0
  %649 = vmatmul.mubr.f32.gmra.mrb[0].mxu0 %v273
  %v650 = vpop.f32.mrb[0].mxu0
  %v651 = vadd.f32 %v95, %v650
  %v652 = vpop.f32.mrb[0].mxu0
  %653 = vmatprep.mubr.f32.mxu0 0.0
  %654 = vmatmul.mubr.f32.gmra.mrb[0].mxu0 %v276
  %v655 = vpop.f32.mrb[0].mxu0
  %v656 = vadd.f32 %v95, %v655
  %v657 = vpop.f32.mrb[0].mxu0
  %658 = vmatprep.mubr.f32.mxu0 0.0
  %659 = vmatmul.mubr.f32.gmra.mrb[0].mxu0 %v279
  %v660 = vpop.f32.mrb[0].mxu0
  %v661 = vadd.f32 %v95, %v660
  %v662 = vpop.f32.mrb[0].mxu0
  %663 = vmatprep.mubr.f32.mxu0 0.0
  %664 = vmatmul.mubr.f32.gmra.mrb[0].mxu0 %v282
  %v665 = vpop.f32.mrb[0].mxu0
  %v666 = vadd.f32 %v95, %v665
  %v667 = vpop.f32.mrb[0].mxu0
  %668 = vmatprep.mubr.f32.mxu0 0.0
  %669 = vmatmul.mubr.f32.gmra.mrb[0].mxu0 %v285
  %v670 = vpop.f32.mrb[0].mxu0
  %v671 = vadd.f32 %v95, %v670
  %v672 = vpop.f32.mrb[0].mxu0
  %673 = vmatprep.mubr.f32.mxu0 0.0
  %674 = vmatmul.mubr.f32.gmra.mrb[0].mxu0 %v288
  %v675 = vpop.f32.mrb[0].mxu0
  %v676 = vadd.f32 %v95, %v675
  %v677 = vpop.f32.mrb[0].mxu0
  %678 = vdwg.mxu0
  %v679 = vmax.f32 %v361, 0.0
  %v680 = vmax.f32 %v366, 0.0
  %v681 = vmax.f32 %v371, 0.0
  %v682 = vmax.f32 %v376, 0.0
  %v683 = vmax.f32 %v381, 0.0
  %v684 = vmax.f32 %v386, 0.0
  %v685 = vmax.f32 %v391, 0.0
  %v686 = vmax.f32 %v396, 0.0
  %v687 = vmax.f32 %v401, 0.0
  %v688 = vmax.f32 %v406, 0.0
  %v689 = vmax.f32 %v411, 0.0
  %v690 = vmax.f32 %v416, 0.0
  %v691 = vmax.f32 %v421, 0.0
  %v692 = vmax.f32 %v426, 0.0
  %v693 = vmax.f32 %v431, 0.0
  %v694 = vmax.f32 %v436, 0.0
  %v695 = vmax.f32 %v441, 0.0
  %v696 = vmax.f32 %v446, 0.0
  %v697 = vmax.f32 %v451, 0.0
  %v698 = vmax.f32 %v456, 0.0
  %v699 = vmax.f32 %v461, 0.0
  %v700 = vmax.f32 %v466, 0.0
  %v701 = vmax.f32 %v471, 0.0
  %v702 = vmax.f32 %v476, 0.0
  %v703 = vmax.f32 %v481, 0.0
  %v704 = vmax.f32 %v486, 0.0
  %v705 = vmax.f32 %v491, 0.0
  %v706 = vmax.f32 %v496, 0.0
  %v707 = vmax.f32 %v501, 0.0
  %v708 = vmax.f32 %v506, 0.0
  %v709 = vmax.f32 %v511, 0.0
  %v710 = vmax.f32 %v516, 0.0
  %v711 = vmax.f32 %v521, 0.0
  %v712 = vmax.f32 %v526, 0.0
  %v713 = vmax.f32 %v531, 0.0
  %v714 = vmax.f32 %v536, 0.0
  %v715 = vmax.f32 %v541, 0.0
  %v716 = vmax.f32 %v546, 0.0
  %v717 = vmax.f32 %v551, 0.0
  %v718 = vmax.f32 %v556, 0.0
  %v719 = vmax.f32 %v561, 0.0
  %v720 = vmax.f32 %v566, 0.0
  %v721 = vmax.f32 %v571, 0.0
  %v722 = vmax.f32 %v576, 0.0
  %v723 = vmax.f32 %v581, 0.0
  %v724 = vmax.f32 %v586, 0.0
  %v725 = vmax.f32 %v591, 0.0
  %v726 = vmax.f32 %v596, 0.0
  %v727 = vmax.f32 %v601, 0.0
  %v728 = vmax.f32 %v606, 0.0
  %v729 = vmax.f32 %v611, 0.0
  %v730 = vmax.f32 %v616, 0.0
  %v731 = vmax.f32 %v621, 0.0
  %v732 = vmax.f32 %v626, 0.0
  %v733 = vmax.f32 %v631, 0.0
  %v734 = vmax.f32 %v636, 0.0
  %v735 = vmax.f32 %v641, 0.0
  %v736 = vmax.f32 %v646, 0.0
  %v737 = vmax.f32 %v651, 0.0
  %v738 = vmax.f32 %v656, 0.0
  %v739 = vmax.f32 %v661, 0.0
  %v740 = vmax.f32 %v666, 0.0
  %v741 = vmax.f32 %v671, 0.0
  %v742 = vmax.f32 %v676, 0.0
  %v743 = vadd.f32 %v679, %v680
  %v744 = vadd.f32 %v743, %v681
  %v745 = vadd.f32 %v744, %v682
  %v746 = vadd.f32 %v745, %v683
  %v747 = vadd.f32 %v746, %v684
  %v748 = vadd.f32 %v747, %v685
  %v749 = vadd.f32 %v748, %v686
  %v750 = vadd.f32 %v749, %v687
  %v751 = vadd.f32 %v750, %v688
  %v752 = vadd.f32 %v751, %v689
  %v753 = vadd.f32 %v752, %v690
  %v754 = vadd.f32 %v753, %v691
  %v755 = vadd.f32 %v754, %v692
  %v756 = vadd.f32 %v755, %v693
  %v757 = vadd.f32 %v756, %v694
  %v758 = vadd.f32 %v757, %v695
  %v759 = vadd.f32 %v758, %v696
  %v760 = vadd.f32 %v759, %v697
  %v761 = vadd.f32 %v760, %v698
  %v762 = vadd.f32 %v761, %v699
  %v763 = vadd.f32 %v762, %v700
  %v764 = vadd.f32 %v763, %v701
  %v765 = vadd.f32 %v764, %v702
  %v766 = vadd.f32 %v765, %v703
  %v767 = vadd.f32 %v766, %v704
  %v768 = vadd.f32 %v767, %v705
  %v769 = vadd.f32 %v768, %v706
  %v770 = vadd.f32 %v769, %v707
  %v771 = vadd.f32 %v770, %v708
  %v772 = vadd.f32 %v771, %v709
  %v773 = vadd.f32 %v772, %v710
  %v774 = vrot.slane %v773, 4
  %v775 = vadd.f32 %v773, %v774
  %v776 = vrot.slane %v775, 2
  %v777 = vadd.f32 %v775, %v776
  %v778 = vrot.slane %v777, 1
  %v779 = vadd.f32 %v777, %v778
  %v780 = vadd.f32 %v711, %v712
  %v781 = vadd.f32 %v780, %v713
  %v782 = vadd.f32 %v781, %v714
  %v783 = vadd.f32 %v782, %v715
  %v784 = vadd.f32 %v783, %v716
  %v785 = vadd.f32 %v784, %v717
  %v786 = vadd.f32 %v785, %v718
  %v787 = vadd.f32 %v786, %v719
  %v788 = vadd.f32 %v787, %v720
  %v789 = vadd.f32 %v788, %v721
  %v790 = vadd.f32 %v789, %v722
  %v791 = vadd.f32 %v790, %v723
  %v792 = vadd.f32 %v791, %v724
  %v793 = vadd.f32 %v792, %v725
  %v794 = vadd.f32 %v793, %v726
  %v795 = vadd.f32 %v794, %v727
  %v796 = vadd.f32 %v795, %v728
  %v797 = vadd.f32 %v796, %v729
  %v798 = vadd.f32 %v797, %v730
  %v799 = vadd.f32 %v798, %v731
  %v800 = vadd.f32 %v799, %v732
  %v801 = vadd.f32 %v800, %v733
  %v802 = vadd.f32 %v801, %v734
  %v803 = vadd.f32 %v802, %v735
  %v804 = vadd.f32 %v803, %v736
  %v805 = vadd.f32 %v804, %v737
  %v806 = vadd.f32 %v805, %v738
  %v807 = vadd.f32 %v806, %v739
  %v808 = vadd.f32 %v807, %v740
  %v809 = vadd.f32 %v808, %v741
  %v810 = vadd.f32 %v809, %v742
  %v811 = vrot.slane %v810, 4
  %v812 = vadd.f32 %v810, %v811
  %v813 = vrot.slane %v812, 2
  %v814 = vadd.f32 %v812, %v813
  %v815 = vrot.slane %v814, 1
  %v816 = vadd.f32 %v814, %v815
  %v817 = vld [vmem:[%s3] sm:$0x1]
  %v819 = vlaneseq
  %v820 = vshrl.u32 %v819, 7
  %v821 = vsub.s32 0, %v820
  %v822 = vrot.slane %v817, %v821
  %v824 = vmul.f32 %v779, %v822
  %v825 = vmul.f32 %v816, %v822
  %v828 = vrot.slane %v825, 7
  %vm829 = vcmask 1041409
  %v830 = vsel %vm829, %v828, %v824
  %vm832 = vcmask 1041408
  %v833 = vsel %vm832, %v830, 0.0
  %834 = vadd.xlane.f32.xlu0 %v833
  %v835 = vpop.xlane.xlu0 %834
  %s836 = sld [smem:[#allocation2]]
  %v837 = vstv %s836
  %v838 = vadd.f32 %v835, %v837
  %839 = vst [vmem:[%s5] sm:$0x3] %v838
  // Predicated region
  $region22: #{regression_cnn_forward.1} parent=0 // pred_check
    _
  $region23: #{regression_cnn_forward.1} parent=0 // pred_check_branch
    %841 = sbr.rel (0) target = $region25
  $region24: #{regression_cnn_forward.1} parent=0 // pred_region
    _
  $region25: #{regression_cnn_forward.1} parent=0 // pred_fallthru
    _
  // Predicated region
  $region26: #{regression_cnn_forward.1} parent=0 // pred_check
    _
  $region27: #{regression_cnn_forward.1} parent=0 // pred_check_branch
    %843 = sbr.rel (0) target = $region29
  $region28: #{regression_cnn_forward.1} parent=0 // pred_region
    _
  $region29: #{regression_cnn_forward.1} parent=0 // pred_fallthru
    _

</llo_original>
